<compile_context>
chip_gen: v6e
topology: v6e:2x2x1
jax: 0.10.0
libtpu: 0.0.40
codegen_flags: <defaults>
</compile_context>

<pallas_src>
import functools
import math

import jax
import jax.numpy as jnp
from jax import lax
from jax.experimental import pallas as pl
from jax.experimental.pallas import tpu as pltpu


# ----------------------------------------------------------------------------
# Kernel A: fused GWC(3x3, groups=2, bias) + PWC1(1x1) as ONE bf16 MXU matmul.
# ----------------------------------------------------------------------------
def _conv_kernel(p_ref, w_ref, o_ref):
    # p_ref: (9C+1, T) bf16 im2col slab (lane axis = flattened B*H*W tile)
    # w_ref: (C, 9C+1) bf16 fused weights [9 dense GWC taps (+PWC in centre) | bias]
    # o_ref: (C, T) bf16
    o_ref[...] = jnp.dot(w_ref[...], p_ref[...],
                         preferred_element_type=jnp.float32).astype(o_ref.dtype)


def fused_conv(patches, w_cat_bf16, C, n_lanes, vmem_budget=12 * 1024 * 1024):
    """[C, n_lanes] bf16 = w_cat @ patches, lane-tiled to a VMEM budget."""
    K = patches.shape[0]
    # per-lane VMEM bytes: double-buffered bf16 patches + double-buffered bf16 output
    per_lane = 2 * K * 2 + 2 * C * 2
    tile = (vmem_budget // per_lane) // 128 * 128
    tile = max(128, min(tile, n_lanes))
    if tile >= n_lanes and n_lanes % 256 == 0:
        # everything fits: still keep 2 "parallel" lane tiles so both v7x TensorCores
        # get work (on v5e/v6e this is one extra ~0.35 us step -- negligible).
        tile = n_lanes // 2
    if tile >= n_lanes:
        tile = n_lanes
    grid = pl.cdiv(n_lanes, tile)
    return pl.pallas_call(
        _conv_kernel,
        out_shape=jax.ShapeDtypeStruct((C, n_lanes), jnp.bfloat16),
        grid=(grid,),
        in_specs=[
            pl.BlockSpec((K, tile), lambda j: (0, j)),
            pl.BlockSpec((C, K), lambda j: (0, 0)),      # fused weight block resident
        ],
        out_specs=pl.BlockSpec((C, tile), lambda j: (0, j)),
        compiler_params=pltpu.CompilerParams(
            dimension_semantics=("parallel",),
            vmem_limit_bytes=32 * 1024 * 1024),
    )(patches, w_cat_bf16)


# ----------------------------------------------------------------------------
# Kernel B: memory retrieval.  One grid step = a batch of (group, half) pairs;
# memMatrix (single [S, D] bf16 copy) stays VMEM-resident across steps.
# ----------------------------------------------------------------------------
def _memory_kernel(x_ref, mem_ref, o_ref, *, shrink_k):
    # x_ref: (GT, Mh, D) bf16   mem_ref: (S, D) bf16   o_ref: (GT, Mh, D) f32
    GT, Mh, D = x_ref.shape
    S = mem_ref.shape[0]
    x2 = x_ref[...].reshape(GT * Mh, D)                    # bf16
    mem = mem_ref[...]                                     # bf16

    # att = x @ memM^T : single-pass bf16 MXU matmul, f32 accumulation
    att = lax.dot_general(x2, mem, (((1,), (1,)), ((), ())),
                          preferred_element_type=jnp.float32)        # [GT*Mh, S]
    att = att.reshape(GT, Mh, S)

    # softmax along the memory-group axis (torch dim=1)
    m = jnp.max(att, axis=1, keepdims=True)
    e = jnp.exp(att - m)
    y = e * pl.reciprocal(jnp.sum(e, axis=1, keepdims=True), approx=True)

    K = min(Mh - 1, shrink_k)
    # k-th largest along axis 1: K-1 max+mask passes, then a final max (softmax
    # values are in (0, 1], so -1 is a safe "removed" sentinel).
    # TODO(synk): exact ties at the k-th value mask all duplicates at once
    # (torch.topk keeps duplicates); irrelevant for continuous-valued inputs.
    work = y
    for _ in range(K - 1):
        cur = jnp.max(work, axis=1, keepdims=True)
        work = jnp.where(work >= cur, -1.0, work)
    thres = jnp.max(work, axis=1, keepdims=True)                     # [GT, 1, S]

    d = y - thres
    y_hard = jnp.maximum(d, 0.0) * y / (jnp.abs(d) + 1e-12)          # hard_shrink_relu
    l1 = jnp.sum(jnp.abs(y_hard), axis=1, keepdims=True)
    y_hard = y_hard * pl.reciprocal(jnp.maximum(l1, 1e-12), approx=True)  # L1 normalize
    # straight-through estimator: forward value is y_hard

    out = jnp.dot(y_hard.reshape(GT * Mh, S).astype(mem.dtype), mem,
                  preferred_element_type=jnp.float32)                # [GT*Mh, D]
    o_ref[...] = out.reshape(GT, Mh, D).astype(o_ref.dtype)


def memory_apply(xh_bf16, mem_bf16, shrink_k, vmem_budget=12 * 1024 * 1024):
    G, Mh, D = xh_bf16.shape
    S = mem_bf16.shape[0]

    # Groups per grid step: start from 2 parallel steps (keeps both v7x TensorCores
    # busy), grow the step count only if the per-step block would blow the budget.
    steps = 2 if G % 2 == 0 else 1

    def blk_bytes(gt):
        # double-buffered bf16 x + double-buffered f32 out + (2x) resident bf16 memM
        return gt * Mh * D * (2 * 2 + 2 * 4) + 2 * S * D * 2

    while G % (steps * 2) == 0 and blk_bytes(G // steps) > vmem_budget:
        steps *= 2
    GT = G // steps

    kern = functools.partial(_memory_kernel, shrink_k=shrink_k)
    return pl.pallas_call(
        kern,
        out_shape=jax.ShapeDtypeStruct((G, Mh, D), jnp.float32),
        grid=(steps,),
        in_specs=[
            pl.BlockSpec((GT, Mh, D), lambda g: (g, 0, 0)),
            pl.BlockSpec((S, D), lambda g: (0, 0)),       # memM resident (single copy)
        ],
        out_specs=pl.BlockSpec((GT, Mh, D), lambda g: (g, 0, 0)),
        compiler_params=pltpu.CompilerParams(
            dimension_semantics=("parallel",),
            vmem_limit_bytes=32 * 1024 * 1024),
    )(xh_bf16, mem_bf16)


# ----------------------------------------------------------------------------
# Parameter preprocessing + module forward (glue in plain JAX)
# ----------------------------------------------------------------------------
def build_conv_weight(w_gwc, b_gwc, w_pwc, C, groups=2):
    """[C, 9C+1] = [9 dense-expanded GWC taps (PWC1 folded into centre tap) | bias]."""
    cg = C // groups
    cols = []
    for kh in range(3):
        for kw in range(3):
            dense = jnp.zeros((C, C), jnp.float32)
            for g in range(groups):
                sl = slice(g * cg, (g + 1) * cg)
                dense = dense.at[sl, sl].set(w_gwc[sl, :, kh, kw])
            if kh == 1 and kw == 1:
                dense = dense + w_pwc[:, :, 0, 0]        # fold the 1x1 conv
            cols.append(dense)
    cols.append(b_gwc.reshape(C, 1))
    return jnp.concatenate(cols, axis=1)


def _build_patches(x, C, B, H, W):
    """im2col slab [9C+1, B*H*W] (bf16): 9 shifted taps + ones row for the bias."""
    xp = jnp.pad(x, ((0, 0), (0, 0), (1, 1), (1, 1)))
    rows = []
    for kh in range(3):
        for kw in range(3):
            rows.append(jnp.transpose(xp[:, :, kh:kh + H, kw:kw + W],
                                      (1, 0, 2, 3)).reshape(C, B * H * W))
    rows.append(jnp.ones((1, B * H * W), x.dtype))       # bias row
    return jnp.concatenate(rows, axis=0).astype(jnp.bfloat16)


@functools.partial(jax.jit, static_argnums=(3, 4))
def memory_matrix_block_v3(x, w_cat_bf16, memM, num_memory, shrink_thres):
    B, C, H, W = x.shape
    HW = H * W
    D = C * HW

    patches = _build_patches(x, C, B, H, W)              # [9C+1, B*HW] bf16
    y_flat = fused_conv(patches, w_cat_bf16, C, B * HW)  # [C, B*HW]    bf16

    # Single small XLA relayout between the two lane-dense kernels:
    # [C, B, HW] -> [B, C*HW]; the group/half split collapses to a pure reshape
    # because num_memory = 2 * half and the halves are contiguous row blocks.
    x_bd = jnp.transpose(y_flat.reshape(C, B, HW), (1, 0, 2)).reshape(B, D)
    half = num_memory // 2
    xh = x_bd.reshape(B // half, half, D)                # [G, Mh, D] bf16

    out = memory_apply(xh, memM.astype(jnp.bfloat16), shrink_thres)

    # TODO(synk): training-mode Bernoulli mask blend (ratio=0.95) omitted; eval path only.
    return out.reshape(B, C, H, W).astype(x.dtype)


# ----------------------------------------------------------------------------
# Pure-JAX/XLA references (mirror the kernels' bf16 operand rounding points)
# ----------------------------------------------------------------------------
def reference_conv(x, w_gwc, b_gwc, w_pwc):
    """GWC + PWC1 + bias as one dense 3x3 conv with the folded, once-rounded weight."""
    f32 = jnp.float32
    rb = lambda a: a.astype(jnp.bfloat16).astype(f32)
    C = x.shape[1]
    cg = C // 2
    zero = jnp.zeros((cg, cg, 3, 3), f32)
    w_dense = jnp.concatenate(
        [jnp.concatenate([w_gwc[:cg], zero], axis=1),
         jnp.concatenate([zero, w_gwc[cg:]], axis=1)], axis=0)       # [C, C, 3, 3]
    w_dense = w_dense.at[:, :, 1, 1].add(w_pwc[:, :, 0, 0])
    y = lax.conv_general_dilated(rb(x), rb(w_dense), (1, 1), ((1, 1), (1, 1)),
                                 dimension_numbers=('NCHW', 'OIHW', 'NCHW'),
                                 precision=lax.Precision.HIGHEST)
    return y + rb(b_gwc).reshape(1, -1, 1, 1)


def reference_memory(y, memM, num_memory, shrink_thres):
    """Memory / gumbel-softmax stage on a conv output y [B, C, H, W]."""
    f32 = jnp.float32
    rb = lambda a: a.astype(jnp.bfloat16).astype(f32)
    hi = lax.Precision.HIGHEST
    B, C, H, W = y.shape
    xr = rb(y).reshape(B // num_memory, num_memory, C * H * W)
    half = num_memory // 2
    memb = rb(memM)
    outs = []
    for xhalf in (xr[:, :half], xr[:, half:]):
        att = jnp.einsum('nmd,sd->nms', xhalf, memb, precision=hi)
        m = jnp.max(att, axis=1, keepdims=True)
        e = jnp.exp(att - m)
        ysm = e / jnp.sum(e, axis=1, keepdims=True)
        K = min(half - 1, shrink_thres)
        thres = -jnp.sort(-ysm, axis=1)[:, K - 1:K, :]
        d = ysm - thres
        yh = jnp.maximum(d, 0.0) * ysm / (jnp.abs(d) + 1e-12)
        l1 = jnp.sum(jnp.abs(yh), axis=1, keepdims=True)
        yh = yh / jnp.maximum(l1, 1e-12)
        outs.append(jnp.einsum('nms,sd->nmd', rb(yh), memb, precision=hi))
    return jnp.concatenate(outs, axis=1).reshape(B, C, H, W)


if __name__ == "__main__":
    # Shapes consistent with the forward's constraints:
    #   B % num_memory == 0, num_memory even, slot_dim == C*H*W
    B, C, H, W = 8, 8, 8, 8
    NUM_MEMORY = 8
    NUM_SLOTS = 16
    SLOT_DIM = C * H * W          # 512
    SHRINK_THRES = 5              # int -> gumbel_softmax branch (k = min(nm/2 - 1, 5))

    key = jax.random.PRNGKey(0)
    kx, km, kg, kb, kp = jax.random.split(key, 5)

    x = jax.random.normal(kx, (B, C, H, W), jnp.float32)

    stdv = 1.0 / math.sqrt(SLOT_DIM)
    memM = jax.random.uniform(km, (NUM_SLOTS, SLOT_DIM), jnp.float32, -stdv, stdv)

    fan_g = (C // 2) * 9
    bg = 1.0 / math.sqrt(fan_g)
    w_gwc = jax.random.uniform(kg, (C, C // 2, 3, 3), jnp.float32, -bg, bg)
    b_gwc = jax.random.uniform(kb, (C,), jnp.float32, -bg, bg)

    bp = 1.0 / math.sqrt(C)
    w_pwc = jax.random.uniform(kp, (C, C, 1, 1), jnp.float32, -bp, bp)

    w_cat_bf16 = build_conv_weight(w_gwc, b_gwc, w_pwc, C, groups=2).astype(jnp.bfloat16)

    # --- run the full fused pipeline once ---
    out = memory_matrix_block_v3(x, w_cat_bf16, memM, NUM_MEMORY, SHRINK_THRES)
    out = jax.block_until_ready(out)
    assert out.shape == (B, C, H, W), out.shape

    # --- stage 1 check: fused conv kernel (+ im2col + weight folding) vs lax.conv ---
    patches = _build_patches(x, C, B, H, W)
    y_flat = fused_conv(patches, w_cat_bf16, C, B * H * W)            # [C, B*HW] bf16
    y_conv = jnp.transpose(y_flat.reshape(C, B, H, W),
                           (1, 0, 2, 3)).astype(jnp.float32)          # [B, C, H, W]
    y_ref = reference_conv(x, w_gwc, b_gwc, w_pwc)
    conv_err = float(jnp.max(jnp.abs(y_conv - y_ref)))
    assert conv_err < 1e-2, f"conv max abs err {conv_err}"            # ~bf16 output ulp

    # --- stage 2 + glue check: full-pipeline output vs JAX memory reference applied
    #     to the kernel's (bit-identical) conv output -------------------------------
    ref_out = reference_memory(y_conv, memM, NUM_MEMORY, SHRINK_THRES)
    mem_err = float(jnp.max(jnp.abs(out - ref_out)))
    assert mem_err < 2e-3, f"memory max abs err {mem_err}"

    print("KERNEL_OK")
</pallas_src>

<mosaic_0001>
module attributes {stable_mosaic.version = 11 : i64} {
  func.func @_memory_kernel(%arg0: i32, %arg1: memref<1x4x512xbf16, #tpu.memory_space<vmem>>, %arg2: memref<16x512xbf16, #tpu.memory_space<vmem>>, %arg3: memref<1x4x512xf32, #tpu.memory_space<vmem>>) attributes {dimension_semantics = [#tpu.dimension_semantics<parallel>], iteration_bounds = array<i64: 2>, scalar_prefetch = 0 : i64, scratch_operands = 0 : i64, tpu.core_type = #tpu.core_type<tc>, window_params = [{transform_indices = @transform_0, window_bounds = array<i64: 1, 4, 512>}, {pipeline_mode = #tpu.pipeline_mode<synchronous>, transform_indices = @transform_1, window_bounds = array<i64: 16, 512>}, {transform_indices = @transform_2, window_bounds = array<i64: 1, 4, 512>}]} {
    %c0 = arith.constant 0 : index
    %c0_0 = arith.constant 0 : index
    %c0_1 = arith.constant 0 : index
    %0 = vector.load %arg1[%c0, %c0_0, %c0_1] : memref<1x4x512xbf16, #tpu.memory_space<vmem>>, vector<1x4x512xbf16>
    %1 = vector.shape_cast %0 : vector<1x4x512xbf16> to vector<4x512xbf16>
    %c0_2 = arith.constant 0 : index
    %c0_3 = arith.constant 0 : index
    %2 = vector.load %arg2[%c0_2, %c0_3] : memref<16x512xbf16, #tpu.memory_space<vmem>>, vector<16x512xbf16>
    %cst = arith.constant dense<0.000000e+00> : vector<4x16xf32>
    %3 = tpu.matmul %1, %2, %cst {dimension_numbers = #tpu.dot_dimension_numbers<[1], [1], [0], [0], [0, 0, 1, 0], [], []>} : vector<4x512xbf16>, vector<16x512xbf16>, vector<4x16xf32> -> vector<4x16xf32>
    %4 = vector.shape_cast %3 : vector<4x16xf32> to vector<1x4x16xf32>
    %cst_4 = arith.constant dense<0xFF800000> : vector<1x16xf32>
    %5 = vector.multi_reduction <maximumf>, %4, %cst_4 [1] : vector<1x4x16xf32> to vector<1x16xf32>
    %6 = vector.shape_cast %5 : vector<1x16xf32> to vector<1x1x16xf32>
    %7 = vector.broadcast %6 : vector<1x1x16xf32> to vector<1x4x16xf32>
    %8 = arith.subf %4, %7 : vector<1x4x16xf32>
    %9 = math.exp %8 : vector<1x4x16xf32>
    %cst_5 = arith.constant dense<0.000000e+00> : vector<1x16xf32>
    %10 = vector.multi_reduction <add>, %9, %cst_5 [1] : vector<1x4x16xf32> to vector<1x16xf32>
    %11 = vector.shape_cast %10 : vector<1x16xf32> to vector<1x1x16xf32>
    %12 = tpu.reciprocal %11 {approx = true} : vector<1x1x16xf32> -> vector<1x1x16xf32>
    %13 = vector.broadcast %12 : vector<1x1x16xf32> to vector<1x4x16xf32>
    %14 = arith.mulf %9, %13 : vector<1x4x16xf32>
    %cst_6 = arith.constant dense<0xFF800000> : vector<1x16xf32>
    %15 = vector.multi_reduction <maximumf>, %14, %cst_6 [1] : vector<1x4x16xf32> to vector<1x16xf32>
    %16 = vector.shape_cast %15 : vector<1x16xf32> to vector<1x1x16xf32>
    %17 = vector.broadcast %16 : vector<1x1x16xf32> to vector<1x4x16xf32>
    %18 = arith.cmpf oge, %14, %17 : vector<1x4x16xf32>
    %cst_7 = arith.constant -1.000000e+00 : f32
    %19 = vector.broadcast %cst_7 : f32 to vector<1x4x16xf32>
    %20 = arith.select %18, %19, %14 : vector<1x4x16xi1>, vector<1x4x16xf32>
    %cst_8 = arith.constant dense<0xFF800000> : vector<1x16xf32>
    %21 = vector.multi_reduction <maximumf>, %20, %cst_8 [1] : vector<1x4x16xf32> to vector<1x16xf32>
    %22 = vector.shape_cast %21 : vector<1x16xf32> to vector<1x1x16xf32>
    %23 = vector.broadcast %22 : vector<1x1x16xf32> to vector<1x4x16xf32>
    %24 = arith.cmpf oge, %20, %23 : vector<1x4x16xf32>
    %cst_9 = arith.constant -1.000000e+00 : f32
    %25 = vector.broadcast %cst_9 : f32 to vector<1x4x16xf32>
    %26 = arith.select %24, %25, %20 : vector<1x4x16xi1>, vector<1x4x16xf32>
    %cst_10 = arith.constant dense<0xFF800000> : vector<1x16xf32>
    %27 = vector.multi_reduction <maximumf>, %26, %cst_10 [1] : vector<1x4x16xf32> to vector<1x16xf32>
    %28 = vector.shape_cast %27 : vector<1x16xf32> to vector<1x1x16xf32>
    %29 = vector.broadcast %28 : vector<1x1x16xf32> to vector<1x4x16xf32>
    %30 = arith.subf %14, %29 : vector<1x4x16xf32>
    %cst_11 = arith.constant 0.000000e+00 : f32
    %31 = vector.broadcast %cst_11 : f32 to vector<1x4x16xf32>
    %32 = arith.maximumf %30, %31 : vector<1x4x16xf32>
    %33 = arith.mulf %32, %14 : vector<1x4x16xf32>
    %34 = math.absf %30 : vector<1x4x16xf32>
    %cst_12 = arith.constant 9.99999996E-13 : f32
    %35 = vector.broadcast %cst_12 : f32 to vector<1x4x16xf32>
    %36 = arith.addf %34, %35 : vector<1x4x16xf32>
    %37 = arith.divf %33, %36 : vector<1x4x16xf32>
    %38 = math.absf %37 : vector<1x4x16xf32>
    %cst_13 = arith.constant dense<0.000000e+00> : vector<1x16xf32>
    %39 = vector.multi_reduction <add>, %38, %cst_13 [1] : vector<1x4x16xf32> to vector<1x16xf32>
    %40 = vector.shape_cast %39 : vector<1x16xf32> to vector<1x1x16xf32>
    %cst_14 = arith.constant 9.99999996E-13 : f32
    %41 = vector.broadcast %cst_14 : f32 to vector<1x1x16xf32>
    %42 = arith.maximumf %40, %41 : vector<1x1x16xf32>
    %43 = tpu.reciprocal %42 {approx = true} : vector<1x1x16xf32> -> vector<1x1x16xf32>
    %44 = vector.broadcast %43 : vector<1x1x16xf32> to vector<1x4x16xf32>
    %45 = arith.mulf %37, %44 : vector<1x4x16xf32>
    %46 = vector.shape_cast %45 : vector<1x4x16xf32> to vector<4x16xf32>
    %47 = arith.truncf %46 : vector<4x16xf32> to vector<4x16xbf16>
    %cst_15 = arith.constant dense<0.000000e+00> : vector<4x512xf32>
    %48 = tpu.matmul %47, %2, %cst_15 {dimension_numbers = #tpu.dot_dimension_numbers<[1], [0], [0], [1], [0, 0, 1, 1], [], []>} : vector<4x16xbf16>, vector<16x512xbf16>, vector<4x512xf32> -> vector<4x512xf32>
    %49 = vector.shape_cast %48 : vector<4x512xf32> to vector<1x4x512xf32>
    %c0_16 = arith.constant 0 : index
    %c0_17 = arith.constant 0 : index
    %c0_18 = arith.constant 0 : index
    %50 = vector.load %arg3[%c0_16, %c0_17, %c0_18] : memref<1x4x512xf32, #tpu.memory_space<vmem>>, vector<1x4x512xf32>
    tpu.vector_store %arg3[%c0_16, %c0_17, %c0_18], %49 {strides = array<i32>} : memref<1x4x512xf32, #tpu.memory_space<vmem>>, vector<1x4x512xf32>,
    return
  }
  func.func @transform_0(%arg0: i32) -> (i32, i32, i32) {
    %c0_i32 = arith.constant 0 : i32
    %c0_i32_0 = arith.constant 0 : i32
    %c0_i32_1 = arith.constant 0 : i32
    return %arg0, %c0_i32, %c0_i32_0 : i32, i32, i32
  }
  func.func @transform_1(%arg0: i32) -> (i32, i32) {
    %c0_i32 = arith.constant 0 : i32
    %c0_i32_0 = arith.constant 0 : i32
    %c0_i32_1 = arith.constant 0 : i32
    return %c0_i32, %c0_i32_0 : i32, i32
  }
  func.func @transform_2(%arg0: i32) -> (i32, i32, i32) {
    %c0_i32 = arith.constant 0 : i32
    %c0_i32_0 = arith.constant 0 : i32
    %c0_i32_1 = arith.constant 0 : i32
    return %arg0, %c0_i32, %c0_i32_0 : i32, i32, i32
  }
}

module attributes {stable_mosaic.version = 11 : i64} {
  func.func @_conv_kernel(%arg0: i32, %arg1: memref<73x256xbf16, #tpu.memory_space<vmem>>, %arg2: memref<8x73xbf16, #tpu.memory_space<vmem>>, %arg3: memref<8x256xbf16, #tpu.memory_space<vmem>>) attributes {dimension_semantics = [#tpu.dimension_semantics<parallel>], iteration_bounds = array<i64: 2>, scalar_prefetch = 0 : i64, scratch_operands = 0 : i64, tpu.core_type = #tpu.core_type<tc>, window_params = [{transform_indices = @transform_0, window_bounds = array<i64: 73, 256>}, {pipeline_mode = #tpu.pipeline_mode<synchronous>, transform_indices = @transform_1, window_bounds = array<i64: 8, 73>}, {transform_indices = @transform_2, window_bounds = array<i64: 8, 256>}]} {
    %c0 = arith.constant 0 : index
    %c0_0 = arith.constant 0 : index
    %0 = vector.load %arg2[%c0, %c0_0] : memref<8x73xbf16, #tpu.memory_space<vmem>>, vector<8x73xbf16>
    %c0_1 = arith.constant 0 : index
    %c0_2 = arith.constant 0 : index
    %1 = vector.load %arg1[%c0_1, %c0_2] : memref<73x256xbf16, #tpu.memory_space<vmem>>, vector<73x256xbf16>
    %cst = arith.constant dense<0.000000e+00> : vector<8x256xf32>
    %2 = tpu.matmul %0, %1, %cst {dimension_numbers = #tpu.dot_dimension_numbers<[1], [0], [0], [1], [0, 0, 1, 1], [], []>} : vector<8x73xbf16>, vector<73x256xbf16>, vector<8x256xf32> -> vector<8x256xf32>
    %3 = arith.truncf %2 : vector<8x256xf32> to vector<8x256xbf16>
    %c0_3 = arith.constant 0 : index
    %c0_4 = arith.constant 0 : index
    %4 = vector.load %arg3[%c0_3, %c0_4] : memref<8x256xbf16, #tpu.memory_space<vmem>>, vector<8x256xbf16>
    tpu.vector_store %arg3[%c0_3, %c0_4], %3 {strides = array<i32>} : memref<8x256xbf16, #tpu.memory_space<vmem>>, vector<8x256xbf16>,
    return
  }
  func.func @transform_0(%arg0: i32) -> (i32, i32) {
    %c0_i32 = arith.constant 0 : i32
    %c0_i32_0 = arith.constant 0 : i32
    return %c0_i32, %arg0 : i32, i32
  }
  func.func @transform_1(%arg0: i32) -> (i32, i32) {
    %c0_i32 = arith.constant 0 : i32
    %c0_i32_0 = arith.constant 0 : i32
    %c0_i32_1 = arith.constant 0 : i32
    return %c0_i32, %c0_i32_0 : i32, i32
  }
  func.func @transform_2(%arg0: i32) -> (i32, i32) {
    %c0_i32 = arith.constant 0 : i32
    %c0_i32_0 = arith.constant 0 : i32
    return %c0_i32, %arg0 : i32, i32
  }
}

</mosaic_0001>

<llo_original>
// kernel: memory_matrix_block_v3.2
$region0: #{memory_matrix_block_v3.2}
  #allocation0 [shape = 'u32[]', space=smem, size = 0x4, offset = 0x4, fixed_abs, tag = 'smem constant byte address 0x4 - core index']
  #allocation1 [shape = 'u32[144,128]{1,0:T(1,128)}', space=vmem, size = 0x12000, scoped, tag = 'internal scratch']
  %s0 = inlined_call_operand.vmem [shape: bf16[73,512], index: 0, kind: input, shape index: {}]
  %s1 = inlined_call_operand.vmem [shape: bf16[8,73], index: 1, kind: input, shape index: {}]
  %s2 = inlined_call_operand.vmem [shape: bf16[8,512], index: 2, kind: output, shape index: {}]
  %s3 = sld [smem:[#allocation0]]
  $region79: #{memory_matrix_block_v3.2} parent=0
    _
  %s5 = ssub.s32 1, %s3
  %s6 = scalar_select 0, %s5, %s3
  $region1: #{memory_matrix_block_v3.2} parent=0
    #allocation2 [shape = 'u8[81920]{0}', space=vmem, size = 0x14000, scoped, tag = 'input window, operand 0']
    loop: start=0, step=1, limit=4
    $region2: #{memory_matrix_block_v3.2} parent=1 // loop_pre_header
      _
    $region3: #{memory_matrix_block_v3.2} parent=1 // loop_header
      %s8 = sphi 0, %s12
      %p9 = scmp.ge.s32.totalorder %s8, 4
      %s18 = sphi 0, %s20
      %s21 = sphi 0, %s18
      %s22 = sphi 0, %s21
      %s38 = sphi 0, %s22
      %s42 = sphi 0, %s42
      %s44 = sphi 0, %s42
      %s45 = sphi 0, %s44
      %s59 = sphi 0, %s45
      %s65 = sphi 0, %s67
      %s68 = sphi 0, %s65
      %s69 = sphi 0, %s68
      %s85 = sphi 0, %s69
    $region4: #{memory_matrix_block_v3.2} parent=1 // loop_header_branch
      %11 = sbr.rel (%p9) target = $region8
    $region5: #{memory_matrix_block_v3.2} parent=1 // loop_body
      %s13 = ssub.s32 %s8, 1
      %s14 = ssub.s32 %s8, 2
      %s15 = sadd.s32 %s8, 1
      %s16 = ssub.s32 %s8, %s15
      %p17 = scmp.eq.s32.totalorder %s16, 0
      %s19 = sadd.s32 %s18, 1
      %s20 = scalar_select %p17, %s18, %s19
      %p23 = pneg %p17
      %p24 = scmp.eq.s32.totalorder %s8, 1
      %p25 = por %p23, %p24
      %p26 = scmp.ne.s32.totalorder %s18, %s21
      %p27 = scmp.eq.s32.totalorder %s8, 0
      %p28 = por %p26, %p27
      %p29 = scmp.ne.s32.totalorder %s18, %s21
      %p30 = scmp.eq.s32.totalorder %s13, 1
      %p31 = por %p29, %p30
      %p32 = scmp.ne.s32.totalorder %s21, %s22
      %p33 = scmp.eq.s32.totalorder %s13, 0
      %p34 = por %p32, %p33
      %p35 = scmp.ne.s32.totalorder %s21, %s22
      %p36 = scmp.eq.s32.totalorder %s14, 1
      %p37 = por %p35, %p36
      %p39 = scmp.ne.s32.totalorder %s22, %s38
      %p40 = scmp.eq.s32.totalorder %s14, 0
      %p41 = por %p39, %p40
      %s43 = sadd.s32 %s42, 1
      %p46 = scmp.eq.s32.totalorder %s8, 1
      %p47 = scmp.ne.s32.totalorder %s42, %s44
      %p48 = scmp.eq.s32.totalorder %s8, 0
      %p49 = por %p47, %p48
      %p50 = scmp.ne.s32.totalorder %s42, %s44
      %p51 = scmp.eq.s32.totalorder %s13, 1
      %p52 = por %p50, %p51
      %p53 = scmp.ne.s32.totalorder %s44, %s45
      %p54 = scmp.eq.s32.totalorder %s13, 0
      %p55 = por %p53, %p54
      %p56 = scmp.ne.s32.totalorder %s44, %s45
      %p57 = scmp.eq.s32.totalorder %s14, 1
      %p58 = por %p56, %p57
      %p60 = scmp.ne.s32.totalorder %s45, %s59
      %p61 = scmp.eq.s32.totalorder %s14, 0
      %p62 = por %p60, %p61
      %s63 = ssub.s32 %s8, %s15
      %p64 = scmp.eq.s32.totalorder %s63, 0
      %s66 = sadd.s32 %s65, 1
      %s67 = scalar_select %p64, %s65, %s66
      %p70 = pneg %p64
      %p71 = scmp.eq.s32.totalorder %s8, 1
      %p72 = por %p70, %p71
      %p73 = scmp.ne.s32.totalorder %s65, %s68
      %p74 = scmp.eq.s32.totalorder %s8, 0
      %p75 = por %p73, %p74
      %p76 = scmp.ne.s32.totalorder %s65, %s68
      %p77 = scmp.eq.s32.totalorder %s13, 1
      %p78 = por %p76, %p77
      %p79 = scmp.ne.s32.totalorder %s68, %s69
      %p80 = scmp.eq.s32.totalorder %s13, 0
      %p81 = por %p79, %p80
      %p82 = scmp.ne.s32.totalorder %s68, %s69
      %p83 = scmp.eq.s32.totalorder %s14, 1
      %p84 = por %p82, %p83
      %p86 = scmp.ne.s32.totalorder %s69, %s85
      %p87 = scmp.eq.s32.totalorder %s14, 0
      %p88 = por %p86, %p87
      %p89 = scmp.le.s32.totalorder 1, %s8
      %p90 = scmp.lt.s32.totalorder %s8, 3
      %p91 = pnand %p89, %p90
      %p92 = pneg %p91
      // Predicated region
      $region9: #{memory_matrix_block_v3.2} parent=5 // pred_check
        _
      $region10: #{memory_matrix_block_v3.2} parent=5 // pred_check_branch
        %94 = sbr.rel (%p91) target = $region12
      $region11: #{memory_matrix_block_v3.2} parent=5 // pred_region
        %s95 = ssub.s32 %s8, 1
        // Predicated region
        $region13: #{memory_matrix_block_v3.2} parent=11 // pred_check
          %p96 = pneg %p55
        $region14: #{memory_matrix_block_v3.2} parent=11 // pred_check_branch
          %98 = sbr.rel (%p96) target = $region16
        $region15: #{memory_matrix_block_v3.2} parent=11 // pred_region
          _
        $region16: #{memory_matrix_block_v3.2} parent=11 // pred_fallthru
          _
      $region12: #{memory_matrix_block_v3.2} parent=5 // pred_fallthru
        _
      %p99 = scmp.lt.s32.totalorder %s8, 2
      // Predicated region
      $region17: #{memory_matrix_block_v3.2} parent=5 // pred_check
        %p100 = pneg %p99
      $region18: #{memory_matrix_block_v3.2} parent=5 // pred_check_branch
        %102 = sbr.rel (%p100) target = $region20
      $region19: #{memory_matrix_block_v3.2} parent=5 // pred_region
        // Predicated region
        $region21: #{memory_matrix_block_v3.2} parent=19 // pred_check
          %p103 = pneg %p28
        $region22: #{memory_matrix_block_v3.2} parent=19 // pred_check_branch
          %105 = sbr.rel (%p103) target = $region24
        $region23: #{memory_matrix_block_v3.2} parent=19 // pred_region
          %s106 = sand.u32 %s18, 1
          %s107 = sand.u32 %s18, 1
          %s108 = smul.addr %s107, 80
          %s109 = scalar_lea.vmem [#allocation2], %s108
          %s110 = smul.u32 2, %s8
          %s111 = smul.addr %s110, 4
          %s112 = scalar_lea.vmem %s0, %s111
          // Predicated region
          $region25: #{memory_matrix_block_v3.2} parent=23 // pred_check
            _
          $region26: #{memory_matrix_block_v3.2} parent=23 // pred_check_branch
            %114 = sbr.rel (0) target = $region28
          $region27: #{memory_matrix_block_v3.2} parent=23 // pred_region
            // Predicated region
            $region29: #{memory_matrix_block_v3.2} parent=27 // pred_check
              _
            $region30: #{memory_matrix_block_v3.2} parent=27 // pred_check_branch
              %116 = sbr.rel (0) target = $region32
            $region31: #{memory_matrix_block_v3.2} parent=27 // pred_region
              // Predicated region
              $region44: #{memory_matrix_block_v3.2} parent=31 // pred_check
                _
              $region45: #{memory_matrix_block_v3.2} parent=31 // pred_check_branch
                %150 = sbr.rel (0) target = $region47
              $region46: #{memory_matrix_block_v3.2} parent=31 // pred_region
                loop: start=0, step=1, limit=1
                $region48: #{memory_matrix_block_v3.2} parent=46 // loop_pre_header
                  _
                $region49: #{memory_matrix_block_v3.2} parent=46 // loop_header
                  %s152 = sphi 0, %s156
                  %p153 = scmp.ge.s32.totalorder %s152, 1
                  %s157 = sphi %s112, %s112
                  %s158 = sphi %s109, %s109
                $region50: #{memory_matrix_block_v3.2} parent=46 // loop_header_branch
                  %155 = sbr.rel (%p153) target = $region54
                $region51: #{memory_matrix_block_v3.2} parent=46 // loop_body
                  %v159 = vld [vmem:[%s157] sm:$0xff]
                  %160 = vst [vmem:[%s158] sm:$0xff] %v159
                  %v161 = vld [vmem:[%s157 + $0x10] sm:$0xff]
                  %162 = vst [vmem:[%s158 + $0x8] sm:$0xff] %v161
                  %v163 = vld [vmem:[%s157 + $0x20] sm:$0xff]
                  %164 = vst [vmem:[%s158 + $0x10] sm:$0xff] %v163
                  %v165 = vld [vmem:[%s157 + $0x30] sm:$0xff]
                  %166 = vst [vmem:[%s158 + $0x18] sm:$0xff] %v165
                  %v167 = vld [vmem:[%s157 + $0x40] sm:$0xff]
                  %168 = vst [vmem:[%s158 + $0x20] sm:$0xff] %v167
                  %v169 = vld [vmem:[%s157 + $0x50] sm:$0xff]
                  %170 = vst [vmem:[%s158 + $0x28] sm:$0xff] %v169
                  %v171 = vld [vmem:[%s157 + $0x60] sm:$0xff]
                  %172 = vst [vmem:[%s158 + $0x30] sm:$0xff] %v171
                  %v173 = vld [vmem:[%s157 + $0x70] sm:$0xff]
                  %174 = vst [vmem:[%s158 + $0x38] sm:$0xff] %v173
                  %v175 = vld [vmem:[%s157 + $0x80] sm:$0xff]
                  %176 = vst [vmem:[%s158 + $0x40] sm:$0xff] %v175
                  %v177 = vld [vmem:[%s157 + $0x90] sm:$0xff]
                  %178 = vst [vmem:[%s158 + $0x48] sm:$0xff] %v177
                $region52: #{memory_matrix_block_v3.2} parent=46 // loop_footer
                  %s156 = sadd.s32 1, %s152
                $region53: #{memory_matrix_block_v3.2} parent=46 // loop_footer_branch
                  %151 = sbr.rel target = $region49
                $region54: #{memory_matrix_block_v3.2} parent=46 // loop_exit
                  _
              $region47: #{memory_matrix_block_v3.2} parent=31 // pred_fallthru
                _
              // Predicated region
              $region55: #{memory_matrix_block_v3.2} parent=31 // pred_check
                _
              $region56: #{memory_matrix_block_v3.2} parent=31 // pred_check_branch
                %180 = sbr.rel target = $region58
              $region57: #{memory_matrix_block_v3.2} parent=31 // pred_region
                _
              $region58: #{memory_matrix_block_v3.2} parent=31 // pred_fallthru
                _
            $region32: #{memory_matrix_block_v3.2} parent=27 // pred_fallthru
              _
            // Predicated region
            $region33: #{memory_matrix_block_v3.2} parent=27 // pred_check
              _
            $region34: #{memory_matrix_block_v3.2} parent=27 // pred_check_branch
              %118 = sbr.rel target = $region36
            $region35: #{memory_matrix_block_v3.2} parent=27 // pred_region
              %s120 = ssub.s32 256, 1
              loop: start=0, step=1, limit=1
              $region37: #{memory_matrix_block_v3.2} parent=35 // loop_pre_header
                _
              $region38: #{memory_matrix_block_v3.2} parent=35 // loop_header
                %s122 = sphi 0, %s126
                %p123 = scmp.ge.s32.totalorder %s122, 1
                %s127 = sphi %s112, %s112
                %s128 = sphi %s109, %s109
              $region39: #{memory_matrix_block_v3.2} parent=35 // loop_header_branch
                %125 = sbr.rel (%p123) target = $region43
              $region40: #{memory_matrix_block_v3.2} parent=35 // loop_body
                %v129 = vld [vmem:[%s127] sm:%s120]
                %130 = vst [vmem:[%s128] sm:%s120] %v129
                %v131 = vld [vmem:[%s127 + $0x10] sm:%s120]
                %132 = vst [vmem:[%s128 + $0x8] sm:%s120] %v131
                %v133 = vld [vmem:[%s127 + $0x20] sm:%s120]
                %134 = vst [vmem:[%s128 + $0x10] sm:%s120] %v133
                %v135 = vld [vmem:[%s127 + $0x30] sm:%s120]
                %136 = vst [vmem:[%s128 + $0x18] sm:%s120] %v135
                %v137 = vld [vmem:[%s127 + $0x40] sm:%s120]
                %138 = vst [vmem:[%s128 + $0x20] sm:%s120] %v137
                %v139 = vld [vmem:[%s127 + $0x50] sm:%s120]
                %140 = vst [vmem:[%s128 + $0x28] sm:%s120] %v139
                %v141 = vld [vmem:[%s127 + $0x60] sm:%s120]
                %142 = vst [vmem:[%s128 + $0x30] sm:%s120] %v141
                %v143 = vld [vmem:[%s127 + $0x70] sm:%s120]
                %144 = vst [vmem:[%s128 + $0x38] sm:%s120] %v143
                %v145 = vld [vmem:[%s127 + $0x80] sm:%s120]
                %146 = vst [vmem:[%s128 + $0x40] sm:%s120] %v145
                %v147 = vld [vmem:[%s127 + $0x90] sm:%s120]
                %148 = vst [vmem:[%s128 + $0x48] sm:%s120] %v147
              $region41: #{memory_matrix_block_v3.2} parent=35 // loop_footer
                %s126 = sadd.s32 1, %s122
              $region42: #{memory_matrix_block_v3.2} parent=35 // loop_footer_branch
                %121 = sbr.rel target = $region38
              $region43: #{memory_matrix_block_v3.2} parent=35 // loop_exit
                _
            $region36: #{memory_matrix_block_v3.2} parent=27 // pred_fallthru
              _
          $region28: #{memory_matrix_block_v3.2} parent=23 // pred_fallthru
            _
          %181 = vnop
        $region24: #{memory_matrix_block_v3.2} parent=19 // pred_fallthru
          _
      $region20: #{memory_matrix_block_v3.2} parent=5 // pred_fallthru
        _
      %p182 = scmp.le.s32.totalorder 1, %s8
      %p183 = scmp.lt.s32.totalorder %s8, 3
      %p184 = pnand %p182, %p183
      %p185 = pneg %p184
      // Predicated region
      $region59: #{memory_matrix_block_v3.2} parent=5 // pred_check
        _
      $region60: #{memory_matrix_block_v3.2} parent=5 // pred_check_branch
        %187 = sbr.rel (%p184) target = $region62
      $region61: #{memory_matrix_block_v3.2} parent=5 // pred_region
        %s188 = ssub.s32 %s8, 1
        %s189 = sand.u32 %s21, 1
        %s190 = sand.u32 %s21, 1
        %s191 = smul.addr %s190, 80
        %s192 = scalar_lea.vmem [#allocation2], %s191
        // Predicated region
        $region63: #{memory_matrix_block_v3.2} parent=61 // pred_check
          %p193 = pneg %p34
        $region64: #{memory_matrix_block_v3.2} parent=61 // pred_check_branch
          %195 = sbr.rel (%p193) target = $region66
        $region65: #{memory_matrix_block_v3.2} parent=61 // pred_region
          _
        $region66: #{memory_matrix_block_v3.2} parent=61 // pred_fallthru
          _
        %s196 = sand.u32 %s21, 1
        %s197 = sand.u32 %s21, 1
        %s198 = smul.addr %s197, 80
        %s199 = scalar_lea.vmem [#allocation2], %s198
        %p200 = pneg %p34
        %p201 = pneg %p31
        %p202 = pneg %p55
        %p203 = pneg %p52
        %p204 = pneg %p81
        %p205 = pneg %p78
        %s206 = smul.u32 2, %s13
        %p207 = scmp.lt.s32.totalorder %s206, 3
        %s208 = scalar_select %p207, %s206, 3
        %s209 = smul.addr %s208, 4
        %s210 = scalar_lea.vmem %s2, %s209
        %s211 = smul.u32 2, %s13
        %s212 = smul.u32 2, %s13
        %p213 = scmp.lt.s32.totalorder %s212, 3
        %s214 = scalar_select %p213, %s212, 3
        %s215 = smul.addr %s214, 4
        %s216 = scalar_lea.vmem %s2, %s215
        %s217 = smul.u32 2, %s13
        %v219 = vld [vmem:[%s1] sm:$0xf]
        %v220 = vld [vmem:[%s192] sm:$0xff]
        %v221 = vld [vmem:[%s192 + $0x8] sm:$0xff]
        %v222 = vld [vmem:[%s192 + $0x10] sm:$0xff]
        %v223 = vld [vmem:[%s192 + $0x18] sm:$0xff]
        %v224 = vld [vmem:[%s192 + $0x20] sm:$0xff]
        %v225 = vld [vmem:[%s192 + $0x28] sm:$0xff]
        %v226 = vld [vmem:[%s192 + $0x30] sm:$0xff]
        %v227 = vld [vmem:[%s192 + $0x38] sm:$0xff]
        %v228 = vld [vmem:[%s192 + $0x40] sm:$0xff]
        %v229 = vld [vmem:[%s192 + $0x48] sm:$0x11]
        %v240 = vunpack.c.l.b16 %v220
        %v241 = vunpack.c.h.b16 %v220
        %v242 = vunpack.c.l.b16 %v221
        %v243 = vunpack.c.h.b16 %v221
        %v244 = vunpack.c.l.b16 %v222
        %v245 = vunpack.c.h.b16 %v222
        %v246 = vunpack.c.l.b16 %v223
        %v247 = vunpack.c.h.b16 %v223
        %v248 = vunpack.c.l.b16 %v224
        %v249 = vunpack.c.h.b16 %v224
        %v250 = vunpack.c.l.b16 %v225
        %v251 = vunpack.c.h.b16 %v225
        %v252 = vunpack.c.l.b16 %v226
        %v253 = vunpack.c.h.b16 %v226
        %v254 = vunpack.c.l.b16 %v227
        %v255 = vunpack.c.h.b16 %v227
        %v256 = vunpack.c.l.b16 %v228
        %v257 = vunpack.c.h.b16 %v228
        %v258 = vunpack.c.l.b16 %v229
        %v259 = vunpack.c.h.b16 %v229
        %v260 = vpack.c.b16 %v242, %v240
        %v261 = vpack.c.b16 %v243, %v241
        %v262 = vpack.c.b16 %v246, %v244
        %v263 = vpack.c.b16 %v247, %v245
        %v264 = vpack.c.b16 %v250, %v248
        %v265 = vpack.c.b16 %v251, %v249
        %v266 = vpack.c.b16 %v254, %v252
        %v267 = vpack.c.b16 %v255, %v253
        %v268 = vpack.c.b16 %v258, %v256
        %v269 = vpack.c.b16 %v259, %v257
        %vm278 = vcmask 596992
        %v280 = vsel %vm278, %v219, 0
        %vm282 = vcmask 1043456
        %vm283 = vcmask 1044480
        %v284 = vsel %vm282, 4294967295, 65535
        %v285 = vsel %vm283, %v284, 0
        %v287 = vand.u32 %v268, %v285
        %v290 = vand.u32 %v269, %v285
        %292 = vmatprep.subr.bf16.mxu0 0
        %293 = vmatpush1.bf16.msra.mxu0 0
        %294 = vmatprep.subr.bf16.mxu0 0
        %295 = vmatpush1.bf16.msra.mxu0 0
        %296 = vmatprep.subr.bf16.mxu0 0
        %297 = vmatpush1.bf16.msra.mxu0 0
        %298 = vmatprep.subr.bf16.mxu0 %v290
        %299 = vmatpush1.bf16.msra.mxu0 %v287
        %300 = vmatprep.subr.bf16.mxu0 %v267
        %301 = vmatpush1.bf16.msra.mxu0 %v266
        %302 = vmatprep.subr.bf16.mxu0 %v265
        %303 = vmatpush1.bf16.msra.mxu0 %v264
        %304 = vmatprep.subr.bf16.mxu0 %v263
        %305 = vmatpush1.bf16.msra.mxu0 %v262
        %306 = vmatprep.subr.bf16.mxu0 %v261
        %307 = vmatpush1.bf16.msra.mxu0 %v260
        %308 = vmatprep.subr.bf16.mxu0 0
        %309 = vmatpush2.bf16.msra.mxu0 0
        %310 = vmatprep.subr.bf16.mxu0 0
        %311 = vmatpush2.bf16.msra.mxu0 0
        %312 = vmatprep.subr.bf16.mxu0 0
        %313 = vmatpush2.bf16.msra.mxu0 0
        %314 = vmatprep.subr.bf16.mxu0 0
        %315 = vmatpush2.bf16.msra.mxu0 0
        %316 = vmatprep.subr.bf16.mxu0 0
        %317 = vmatpush2.bf16.msra.mxu0 0
        %318 = vmatprep.subr.bf16.mxu0 0
        %319 = vmatpush2.bf16.msra.mxu0 0
        %320 = vmatprep.subr.bf16.mxu0 0
        %321 = vmatpush2.bf16.msra.mxu0 0
        %322 = vmatprep.subr.bf16.mxu0 0
        %323 = vmatpush2.bf16.msra.mxu0 0
        %324 = vmatprep.mubr.bf16.mxu0 0
        %325 = vmatmul.mubr.bf16.gmra.mxu0 %v280
        %v326 = vpop.f32.mrf.mxu0
        %v327 = vadd.f32 0.0, %v326
        %v328 = vpop.f32.mrf.mxu0
        %v329 = vadd.f32 0.0, %v328
        %v330 = vpop.f32.mrf.mxu0
        %v331 = vpop.f32.mrf.mxu0
        %332 = vdwg.mxu0
        %v333 = vpack.c.bf16 %v327, %v327
        %v334 = vpack.c.bf16 %v329, %v329
        %v337 = vunpack.c.l.b16 %v333
        %v338 = vunpack.c.l.b16 %v334
        %v339 = vpack.c.b16 %v338, %v337
        %341 = vst [vmem:[%s216] sm:$0xff] %v339
        %s342 = smul.u32 2, %s13
        %p343 = scmp.lt.s32.totalorder %s342, 3
        %s344 = scalar_select %p343, %s342, 3
        %s345 = smul.addr %s344, 4
        %s346 = scalar_lea.vmem %s2, %s345
        // Predicated region
        $region67: #{memory_matrix_block_v3.2} parent=61 // pred_check
          %p347 = pneg %p78
        $region68: #{memory_matrix_block_v3.2} parent=61 // pred_check_branch
          %349 = sbr.rel (%p347) target = $region70
        $region69: #{memory_matrix_block_v3.2} parent=61 // pred_region
          %s350 = smul.u32 2, %s13
        $region70: #{memory_matrix_block_v3.2} parent=61 // pred_fallthru
          _
      $region62: #{memory_matrix_block_v3.2} parent=5 // pred_fallthru
        _
      %p351 = scmp.le.s32.totalorder 2, %s8
      // Predicated region
      $region71: #{memory_matrix_block_v3.2} parent=5 // pred_check
        %p352 = pneg %p351
      $region72: #{memory_matrix_block_v3.2} parent=5 // pred_check_branch
        %354 = sbr.rel (%p352) target = $region74
      $region73: #{memory_matrix_block_v3.2} parent=5 // pred_region
        %s355 = ssub.s32 %s8, 2
        // Predicated region
        $region75: #{memory_matrix_block_v3.2} parent=73 // pred_check
          %p356 = pneg %p84
        $region76: #{memory_matrix_block_v3.2} parent=73 // pred_check_branch
          %358 = sbr.rel (%p356) target = $region78
        $region77: #{memory_matrix_block_v3.2} parent=73 // pred_region
          %s359 = smul.u32 2, %s14
          %p360 = scmp.lt.s32.totalorder %s359, 3
          %s361 = scalar_select %p360, %s359, 3
          %s362 = smul.addr %s361, 4
          %s363 = scalar_lea.vmem %s2, %s362
        $region78: #{memory_matrix_block_v3.2} parent=73 // pred_fallthru
          _
      $region74: #{memory_matrix_block_v3.2} parent=5 // pred_fallthru
        _
    $region6: #{memory_matrix_block_v3.2} parent=1 // loop_footer
      %s12 = sadd.s32 1, %s8
    $region7: #{memory_matrix_block_v3.2} parent=1 // loop_footer_branch
      %7 = sbr.rel target = $region3
    $region8: #{memory_matrix_block_v3.2} parent=1 // loop_exit
      _

// kernel: memory_matrix_block_v3.3
$region0: #{memory_matrix_block_v3.3}
  #allocation0 [shape = 'u32[]', space=smem, size = 0x4, offset = 0x4, fixed_abs, tag = 'smem constant byte address 0x4 - core index']
  #allocation1 [shape = 'u32[144,128]{1,0:T(1,128)}', space=vmem, size = 0x12000, scoped, tag = 'internal scratch']
  %s0 = inlined_call_operand.vmem [shape: bf16[2,4,512], index: 0, kind: input, shape index: {}]
  %s1 = inlined_call_operand.vmem [shape: bf16[16,512], index: 1, kind: input, shape index: {}]
  %s2 = inlined_call_operand.vmem [shape: f32[2,4,512], index: 2, kind: output, shape index: {}]
  %s3 = sld [smem:[#allocation0]]
  $region41: #{memory_matrix_block_v3.3} parent=0
    _
  %s5 = ssub.s32 1, %s3
  %s6 = scalar_select 0, %s5, %s3
  loop: start=0, step=1, limit=4
  $region2: #{memory_matrix_block_v3.3} parent=0 // loop_pre_header
    _
  $region3: #{memory_matrix_block_v3.3} parent=0 // loop_header
    %s8 = sphi 0, %s12
    %p9 = scmp.ge.s32.totalorder %s8, 4
    %s18 = sphi 0, %s20
    %s21 = sphi 0, %s18
    %s22 = sphi 0, %s21
    %s38 = sphi 0, %s22
    %s42 = sphi 0, %s42
    %s44 = sphi 0, %s42
    %s45 = sphi 0, %s44
    %s59 = sphi 0, %s45
    %s65 = sphi 0, %s67
    %s68 = sphi 0, %s65
    %s69 = sphi 0, %s68
    %s85 = sphi 0, %s69
  $region4: #{memory_matrix_block_v3.3} parent=0 // loop_header_branch
    %11 = sbr.rel (%p9) target = $region8
  $region5: #{memory_matrix_block_v3.3} parent=0 // loop_body
    %s13 = ssub.s32 %s8, 1
    %s14 = ssub.s32 %s8, 2
    %s15 = sadd.s32 %s8, 1
    %s16 = ssub.s32 %s8, %s15
    %p17 = scmp.eq.s32.totalorder %s16, 0
    %s19 = sadd.s32 %s18, 1
    %s20 = scalar_select %p17, %s18, %s19
    %p23 = pneg %p17
    %p24 = scmp.eq.s32.totalorder %s8, 1
    %p25 = por %p23, %p24
    %p26 = scmp.ne.s32.totalorder %s18, %s21
    %p27 = scmp.eq.s32.totalorder %s8, 0
    %p28 = por %p26, %p27
    %p29 = scmp.ne.s32.totalorder %s18, %s21
    %p30 = scmp.eq.s32.totalorder %s13, 1
    %p31 = por %p29, %p30
    %p32 = scmp.ne.s32.totalorder %s21, %s22
    %p33 = scmp.eq.s32.totalorder %s13, 0
    %p34 = por %p32, %p33
    %p35 = scmp.ne.s32.totalorder %s21, %s22
    %p36 = scmp.eq.s32.totalorder %s14, 1
    %p37 = por %p35, %p36
    %p39 = scmp.ne.s32.totalorder %s22, %s38
    %p40 = scmp.eq.s32.totalorder %s14, 0
    %p41 = por %p39, %p40
    %s43 = sadd.s32 %s42, 1
    %p46 = scmp.eq.s32.totalorder %s8, 1
    %p47 = scmp.ne.s32.totalorder %s42, %s44
    %p48 = scmp.eq.s32.totalorder %s8, 0
    %p49 = por %p47, %p48
    %p50 = scmp.ne.s32.totalorder %s42, %s44
    %p51 = scmp.eq.s32.totalorder %s13, 1
    %p52 = por %p50, %p51
    %p53 = scmp.ne.s32.totalorder %s44, %s45
    %p54 = scmp.eq.s32.totalorder %s13, 0
    %p55 = por %p53, %p54
    %p56 = scmp.ne.s32.totalorder %s44, %s45
    %p57 = scmp.eq.s32.totalorder %s14, 1
    %p58 = por %p56, %p57
    %p60 = scmp.ne.s32.totalorder %s45, %s59
    %p61 = scmp.eq.s32.totalorder %s14, 0
    %p62 = por %p60, %p61
    %s63 = ssub.s32 %s8, %s15
    %p64 = scmp.eq.s32.totalorder %s63, 0
    %s66 = sadd.s32 %s65, 1
    %s67 = scalar_select %p64, %s65, %s66
    %p70 = pneg %p64
    %p71 = scmp.eq.s32.totalorder %s8, 1
    %p72 = por %p70, %p71
    %p73 = scmp.ne.s32.totalorder %s65, %s68
    %p74 = scmp.eq.s32.totalorder %s8, 0
    %p75 = por %p73, %p74
    %p76 = scmp.ne.s32.totalorder %s65, %s68
    %p77 = scmp.eq.s32.totalorder %s13, 1
    %p78 = por %p76, %p77
    %p79 = scmp.ne.s32.totalorder %s68, %s69
    %p80 = scmp.eq.s32.totalorder %s13, 0
    %p81 = por %p79, %p80
    %p82 = scmp.ne.s32.totalorder %s68, %s69
    %p83 = scmp.eq.s32.totalorder %s14, 1
    %p84 = por %p82, %p83
    %p86 = scmp.ne.s32.totalorder %s69, %s85
    %p87 = scmp.eq.s32.totalorder %s14, 0
    %p88 = por %p86, %p87
    %p89 = scmp.le.s32.totalorder 1, %s8
    %p90 = scmp.lt.s32.totalorder %s8, 3
    %p91 = pnand %p89, %p90
    %p92 = pneg %p91
    // Predicated region
    $region9: #{memory_matrix_block_v3.3} parent=5 // pred_check
      _
    $region10: #{memory_matrix_block_v3.3} parent=5 // pred_check_branch
      %94 = sbr.rel (%p91) target = $region12
    $region11: #{memory_matrix_block_v3.3} parent=5 // pred_region
      %s95 = ssub.s32 %s8, 1
      // Predicated region
      $region13: #{memory_matrix_block_v3.3} parent=11 // pred_check
        %p96 = pneg %p55
      $region14: #{memory_matrix_block_v3.3} parent=11 // pred_check_branch
        %98 = sbr.rel (%p96) target = $region16
      $region15: #{memory_matrix_block_v3.3} parent=11 // pred_region
        _
      $region16: #{memory_matrix_block_v3.3} parent=11 // pred_fallthru
        _
    $region12: #{memory_matrix_block_v3.3} parent=5 // pred_fallthru
      _
    %p99 = scmp.lt.s32.totalorder %s8, 2
    // Predicated region
    $region17: #{memory_matrix_block_v3.3} parent=5 // pred_check
      %p100 = pneg %p99
    $region18: #{memory_matrix_block_v3.3} parent=5 // pred_check_branch
      %102 = sbr.rel (%p100) target = $region20
    $region19: #{memory_matrix_block_v3.3} parent=5 // pred_region
      // Predicated region
      $region21: #{memory_matrix_block_v3.3} parent=19 // pred_check
        %p103 = pneg %p28
      $region22: #{memory_matrix_block_v3.3} parent=19 // pred_check_branch
        %105 = sbr.rel (%p103) target = $region24
      $region23: #{memory_matrix_block_v3.3} parent=19 // pred_region
        %p106 = scmp.lt.s32.totalorder %s8, 1
        %s107 = scalar_select %p106, %s8, 1
        %s108 = smul.addr %s107, 4
        %s109 = smul.addr %s108, 2
        %s110 = scalar_lea.vmem %s0, %s109
      $region24: #{memory_matrix_block_v3.3} parent=19 // pred_fallthru
        _
    $region20: #{memory_matrix_block_v3.3} parent=5 // pred_fallthru
      _
    %p111 = scmp.le.s32.totalorder 1, %s8
    %p112 = scmp.lt.s32.totalorder %s8, 3
    %p113 = pnand %p111, %p112
    %p114 = pneg %p113
    // Predicated region
    $region25: #{memory_matrix_block_v3.3} parent=5 // pred_check
      _
    $region26: #{memory_matrix_block_v3.3} parent=5 // pred_check_branch
      %116 = sbr.rel (%p113) target = $region28
    $region27: #{memory_matrix_block_v3.3} parent=5 // pred_region
      %s117 = ssub.s32 %s8, 1
      %p118 = scmp.lt.s32.totalorder %s13, 1
      %s119 = scalar_select %p118, %s13, 1
      %s120 = smul.addr %s119, 4
      %s121 = smul.addr %s120, 2
      %s122 = scalar_lea.vmem %s0, %s121
      %p123 = pneg %p34
      %p124 = pneg %p31
      %p125 = pneg %p55
      %p126 = pneg %p52
      %p127 = pneg %p81
      %p128 = pneg %p78
      %p129 = scmp.lt.s32.totalorder %s13, 1
      %s130 = scalar_select %p129, %s13, 1
      %s131 = smul.addr %s130, 4
      %s132 = smul.addr %s131, 4
      %s133 = scalar_lea.vmem %s2, %s132
      %p134 = scmp.lt.s32.totalorder %s13, 1
      %s135 = scalar_select %p134, %s13, 1
      %s136 = smul.addr %s135, 4
      %s137 = smul.addr %s136, 2
      %s138 = scalar_lea.vmem %s0, %s137
      %p139 = scmp.lt.s32.totalorder %s13, 1
      %s140 = scalar_select %p139, %s13, 1
      %s141 = smul.addr %s140, 4
      %s142 = smul.addr %s141, 4
      %s143 = scalar_lea.vmem %s2, %s142
      %v145 = vld [vmem:[%s138] sm:$0xff]
      %v146 = vld [vmem:[%s1] sm:$0xff]
      %v147 = vld [vmem:[%s1 + $0x8] sm:$0xff]
      %v148 = vld [vmem:[%s1 + $0x10] sm:$0xff]
      %v149 = vld [vmem:[%s1 + $0x18] sm:$0xff]
      %v151 = vcombine.high %v145, %v145
      %v153 = vunpack.c.l.s4 1983009808
      %v154 = vunpack.c.0.s8 %v153
      %v155 = vlaneseq
      %v156 = vshrl.u32 %v155, 7
      %v157 = vsub.s32 %v154, %v156
      %v158 = vrot.slane %v145, %v157
      %v160 = vunpack.c.l.s4 1983009808
      %v161 = vunpack.c.0.s8 %v160
      %v162 = vlaneseq
      %v163 = vshrl.u32 %v162, 7
      %v164 = vsub.s32 %v161, %v163
      %v165 = vrot.slane %v151, %v164
      %v166 = vcombine.high %v158, %v158
      %v167 = vcombine.high %v165, %v165
      %v176 = vunpack.c.l.b16 %v146
      %v177 = vunpack.c.h.b16 %v146
      %v178 = vunpack.c.l.b16 %v147
      %v179 = vunpack.c.h.b16 %v147
      %v180 = vunpack.c.l.b16 %v148
      %v181 = vunpack.c.h.b16 %v148
      %v182 = vunpack.c.l.b16 %v149
      %v183 = vunpack.c.h.b16 %v149
      %v184 = vpack.c.b16 %v180, %v176
      %v185 = vpack.c.b16 %v181, %v177
      %v186 = vpack.c.b16 %v182, %v178
      %v187 = vpack.c.b16 %v183, %v179
      %192 = vmatprep.subr.bf16.mxu0 0
      %193 = vmatpush1.bf16.xpose.msra.mxu0 0
      %194 = vmatprep.subr.bf16.mxu0 0
      %195 = vmatpush1.bf16.xpose.msra.mxu0 0
      %196 = vmatprep.subr.bf16.mxu0 0
      %197 = vmatpush1.bf16.xpose.msra.mxu0 0
      %198 = vmatprep.subr.bf16.mxu0 0
      %199 = vmatpush1.bf16.xpose.msra.mxu0 0
      %200 = vmatprep.subr.bf16.mxu0 0
      %201 = vmatpush1.bf16.xpose.msra.mxu0 0
      %202 = vmatprep.subr.bf16.mxu0 0
      %203 = vmatpush1.bf16.xpose.msra.mxu0 0
      %204 = vmatprep.subr.bf16.mxu0 0
      %205 = vmatpush1.bf16.xpose.msra.mxu0 0
      %206 = vmatprep.subr.bf16.mxu0 %v185
      %207 = vmatpush1.bf16.xpose.msra.mxu0 %v184
      %208 = vmatprep.subr.bf16.mxu0 0
      %209 = vmatpush2.bf16.xpose.msra.mxu0 0
      %210 = vmatprep.subr.bf16.mxu0 0
      %211 = vmatpush2.bf16.xpose.msra.mxu0 0
      %212 = vmatprep.subr.bf16.mxu0 0
      %213 = vmatpush2.bf16.xpose.msra.mxu0 0
      %214 = vmatprep.subr.bf16.mxu0 0
      %215 = vmatpush2.bf16.xpose.msra.mxu0 0
      %216 = vmatprep.subr.bf16.mxu0 0
      %217 = vmatpush2.bf16.xpose.msra.mxu0 0
      %218 = vmatprep.subr.bf16.mxu0 0
      %219 = vmatpush2.bf16.xpose.msra.mxu0 0
      %220 = vmatprep.subr.bf16.mxu0 0
      %221 = vmatpush2.bf16.xpose.msra.mxu0 0
      %222 = vmatprep.subr.bf16.mxu0 0
      %223 = vmatpush2.bf16.xpose.msra.mxu0 0
      %224 = vmatprep.mubr.bf16.mxu0 %v166
      %225 = vmatmul.mubr.bf16.gmra.mxu0 %v158
      %v226 = vpop.f32.mrf.mxu0
      %v227 = vadd.f32 0.0, %v226
      %v228 = vpop.f32.mrf.mxu0
      %v229 = vpop.f32.mrf.mxu0
      %v230 = vpop.f32.mrf.mxu0
      %231 = vdwg.mxu0
      %232 = vmatprep.subr.bf16.mxu0 0
      %233 = vmatpush1.bf16.xpose.msra.mxu0 0
      %234 = vmatprep.subr.bf16.mxu0 0
      %235 = vmatpush1.bf16.xpose.msra.mxu0 0
      %236 = vmatprep.subr.bf16.mxu0 0
      %237 = vmatpush1.bf16.xpose.msra.mxu0 0
      %238 = vmatprep.subr.bf16.mxu0 0
      %239 = vmatpush1.bf16.xpose.msra.mxu0 0
      %240 = vmatprep.subr.bf16.mxu0 0
      %241 = vmatpush1.bf16.xpose.msra.mxu0 0
      %242 = vmatprep.subr.bf16.mxu0 0
      %243 = vmatpush1.bf16.xpose.msra.mxu0 0
      %244 = vmatprep.subr.bf16.mxu0 0
      %245 = vmatpush1.bf16.xpose.msra.mxu0 0
      %246 = vmatprep.subr.bf16.mxu0 %v187
      %247 = vmatpush1.bf16.xpose.msra.mxu0 %v186
      %248 = vmatprep.subr.bf16.mxu0 0
      %249 = vmatpush2.bf16.xpose.msra.mxu0 0
      %250 = vmatprep.subr.bf16.mxu0 0
      %251 = vmatpush2.bf16.xpose.msra.mxu0 0
      %252 = vmatprep.subr.bf16.mxu0 0
      %253 = vmatpush2.bf16.xpose.msra.mxu0 0
      %254 = vmatprep.subr.bf16.mxu0 0
      %255 = vmatpush2.bf16.xpose.msra.mxu0 0
      %256 = vmatprep.subr.bf16.mxu0 0
      %257 = vmatpush2.bf16.xpose.msra.mxu0 0
      %258 = vmatprep.subr.bf16.mxu0 0
      %259 = vmatpush2.bf16.xpose.msra.mxu0 0
      %260 = vmatprep.subr.bf16.mxu0 0
      %261 = vmatpush2.bf16.xpose.msra.mxu0 0
      %262 = vmatprep.subr.bf16.mxu0 0
      %263 = vmatpush2.bf16.xpose.msra.mxu0 0
      %264 = vmatprep.mubr.bf16.mxu0 %v167
      %265 = vmatmul.mubr.bf16.gmra.mxu0 %v165
      %v266 = vpop.f32.mrf.mxu0
      %v267 = vadd.f32 %v227, %v266
      %v268 = vpop.f32.mrf.mxu0
      %v269 = vpop.f32.mrf.mxu0
      %v270 = vpop.f32.mrf.mxu0
      %271 = vdwg.mxu0
      %vm272 = vcmask 125952
      %v273 = vsel %vm272, %v267, -inf
      %v274 = vrot.slane %v273, 4
      %v275 = vmax.f32 %v273, %v274
      %v276 = vrot.slane %v275, 2
      %v277 = vmax.f32 %v275, %v276
      %v278 = vrot.slane %v277, 1
      %v279 = vmax.f32 %v277, %v278
      %v280 = vsub.f32 %v267, %v279
      %v281 = vmul.f32 %v280, 1.442695
      %v282 = vpow.pop %v281
      %v283 = vsel %vm272, %v282, 0.0
      %v284 = vrot.slane %v283, 4
      %v285 = vadd.f32 %v283, %v284
      %v286 = vrot.slane %v285, 2
      %v287 = vadd.f32 %v285, %v286
      %v288 = vrot.slane %v287, 1
      %v289 = vadd.f32 %v287, %v288
      %v290 = vrcp.pop %v289
      %v291 = vmul.f32 %v282, %v290
      %v292 = vsel %vm272, %v291, -inf
      %v293 = vrot.slane %v292, 4
      %v294 = vmax.f32 %v292, %v293
      %v295 = vrot.slane %v294, 2
      %v296 = vmax.f32 %v294, %v295
      %v297 = vrot.slane %v296, 1
      %v298 = vmax.f32 %v296, %v297
      %vm299 = vcmp.ge.f32.partialorder %v291, %v298
      %v300 = vsel %vm299, -1.0, %v291
      %v301 = vsel %vm272, %v300, -inf
      %v302 = vrot.slane %v301, 4
      %v303 = vmax.f32 %v301, %v302
      %v304 = vrot.slane %v303, 2
      %v305 = vmax.f32 %v303, %v304
      %v306 = vrot.slane %v305, 1
      %v307 = vmax.f32 %v305, %v306
      %vm308 = vcmp.ge.f32.partialorder %v300, %v307
      %v309 = vsel %vm308, -1.0, %v300
      %v310 = vsel %vm272, %v309, -inf
      %v311 = vrot.slane %v310, 4
      %v312 = vmax.f32 %v310, %v311
      %v313 = vrot.slane %v312, 2
      %v314 = vmax.f32 %v312, %v313
      %v315 = vrot.slane %v314, 1
      %v316 = vmax.f32 %v314, %v315
      %v317 = vsub.f32 %v291, %v316
      %v318 = vmax.f32 %v317, 0.0
      %v319 = vmul.f32 %v318, %v291
      %v320 = vand.u32 2147483647, %v317
      %v321 = vadd.f32 %v320, 1e-12
      %v322 = vrcp.pop %v321
      %v323 = vmul.f32 %v319, %v322
      %v324 = vand.u32 2147483647, %v323
      %v325 = vsel %vm272, %v324, 0.0
      %v326 = vrot.slane %v325, 4
      %v327 = vadd.f32 %v325, %v326
      %v328 = vrot.slane %v327, 2
      %v329 = vadd.f32 %v327, %v328
      %v330 = vrot.slane %v329, 1
      %v331 = vadd.f32 %v329, %v330
      %v332 = vmax.f32 %v331, 1e-12
      %v333 = vrcp.pop %v332
      %v334 = vmul.f32 %v323, %v333
      %v335 = vpack.c.bf16 %v334, %v334
      %vm336 = vcmask 130048
      %v338 = vsel %vm336, %v335, 0
      %340 = vmatprep.subr.bf16.mxu0 0
      %341 = vmatpush1.bf16.msra.mxu0 0
      %342 = vmatprep.subr.bf16.mxu0 0
      %343 = vmatpush1.bf16.msra.mxu0 0
      %344 = vmatprep.subr.bf16.mxu0 0
      %345 = vmatpush1.bf16.msra.mxu0 0
      %346 = vmatprep.subr.bf16.mxu0 0
      %347 = vmatpush1.bf16.msra.mxu0 0
      %348 = vmatprep.subr.bf16.mxu0 0
      %349 = vmatpush1.bf16.msra.mxu0 0
      %350 = vmatprep.subr.bf16.mxu0 0
      %351 = vmatpush1.bf16.msra.mxu0 0
      %352 = vmatprep.subr.bf16.mxu0 0
      %353 = vmatpush1.bf16.msra.mxu0 0
      %354 = vmatprep.subr.bf16.mxu0 %v185
      %355 = vmatpush1.bf16.msra.mxu0 %v184
      %356 = vmatprep.subr.bf16.mxu0 0
      %357 = vmatpush2.bf16.msra.mxu0 0
      %358 = vmatprep.subr.bf16.mxu0 0
      %359 = vmatpush2.bf16.msra.mxu0 0
      %360 = vmatprep.subr.bf16.mxu0 0
      %361 = vmatpush2.bf16.msra.mxu0 0
      %362 = vmatprep.subr.bf16.mxu0 0
      %363 = vmatpush2.bf16.msra.mxu0 0
      %364 = vmatprep.subr.bf16.mxu0 0
      %365 = vmatpush2.bf16.msra.mxu0 0
      %366 = vmatprep.subr.bf16.mxu0 0
      %367 = vmatpush2.bf16.msra.mxu0 0
      %368 = vmatprep.subr.bf16.mxu0 0
      %369 = vmatpush2.bf16.msra.mxu0 0
      %370 = vmatprep.subr.bf16.mxu0 0
      %371 = vmatpush2.bf16.msra.mxu0 0
      %372 = vmatprep.mubr.bf16.mxu0 0
      %373 = vmatmul.mubr.bf16.gmra.mxu0 %v338
      %v374 = vpop.f32.mrf.mxu0
      %v375 = vadd.f32 0.0, %v374
      %v376 = vpop.f32.mrf.mxu0
      %v377 = vadd.f32 0.0, %v376
      %v378 = vpop.f32.mrf.mxu0
      %v379 = vpop.f32.mrf.mxu0
      %380 = vdwg.mxu0
      %381 = vmatprep.subr.bf16.mxu0 0
      %382 = vmatpush1.bf16.msra.mxu0 0
      %383 = vmatprep.subr.bf16.mxu0 0
      %384 = vmatpush1.bf16.msra.mxu0 0
      %385 = vmatprep.subr.bf16.mxu0 0
      %386 = vmatpush1.bf16.msra.mxu0 0
      %387 = vmatprep.subr.bf16.mxu0 0
      %388 = vmatpush1.bf16.msra.mxu0 0
      %389 = vmatprep.subr.bf16.mxu0 0
      %390 = vmatpush1.bf16.msra.mxu0 0
      %391 = vmatprep.subr.bf16.mxu0 0
      %392 = vmatpush1.bf16.msra.mxu0 0
      %393 = vmatprep.subr.bf16.mxu0 0
      %394 = vmatpush1.bf16.msra.mxu0 0
      %395 = vmatprep.subr.bf16.mxu0 %v187
      %396 = vmatpush1.bf16.msra.mxu0 %v186
      %397 = vmatprep.subr.bf16.mxu0 0
      %398 = vmatpush2.bf16.msra.mxu0 0
      %399 = vmatprep.subr.bf16.mxu0 0
      %400 = vmatpush2.bf16.msra.mxu0 0
      %401 = vmatprep.subr.bf16.mxu0 0
      %402 = vmatpush2.bf16.msra.mxu0 0
      %403 = vmatprep.subr.bf16.mxu0 0
      %404 = vmatpush2.bf16.msra.mxu0 0
      %405 = vmatprep.subr.bf16.mxu0 0
      %406 = vmatpush2.bf16.msra.mxu0 0
      %407 = vmatprep.subr.bf16.mxu0 0
      %408 = vmatpush2.bf16.msra.mxu0 0
      %409 = vmatprep.subr.bf16.mxu0 0
      %410 = vmatpush2.bf16.msra.mxu0 0
      %411 = vmatprep.subr.bf16.mxu0 0
      %412 = vmatpush2.bf16.msra.mxu0 0
      %413 = vmatprep.mubr.bf16.mxu0 0
      %414 = vmatmul.mubr.bf16.gmra.mxu0 %v338
      %v415 = vpop.f32.mrf.mxu0
      %v416 = vadd.f32 0.0, %v415
      %v417 = vpop.f32.mrf.mxu0
      %v418 = vadd.f32 0.0, %v417
      %v419 = vpop.f32.mrf.mxu0
      %v420 = vpop.f32.mrf.mxu0
      %421 = vdwg.mxu0
      %v426 = vcombine.low %v375, %v377
      %v427 = vcombine.low %v416, %v418
      %430 = vst [vmem:[%s143] sm:$0xff] %v426
      %431 = vst [vmem:[%s143 + $0x8] sm:$0xff] %v427
      %p432 = scmp.lt.s32.totalorder %s13, 1
      %s433 = scalar_select %p432, %s13, 1
      %s434 = smul.addr %s433, 4
      %s435 = smul.addr %s434, 4
      %s436 = scalar_lea.vmem %s2, %s435
      // Predicated region
      $region29: #{memory_matrix_block_v3.3} parent=27 // pred_check
        %p437 = pneg %p78
      $region30: #{memory_matrix_block_v3.3} parent=27 // pred_check_branch
        %439 = sbr.rel (%p437) target = $region32
      $region31: #{memory_matrix_block_v3.3} parent=27 // pred_region
        _
      $region32: #{memory_matrix_block_v3.3} parent=27 // pred_fallthru
        _
    $region28: #{memory_matrix_block_v3.3} parent=5 // pred_fallthru
      _
    %p440 = scmp.le.s32.totalorder 2, %s8
    // Predicated region
    $region33: #{memory_matrix_block_v3.3} parent=5 // pred_check
      %p441 = pneg %p440
    $region34: #{memory_matrix_block_v3.3} parent=5 // pred_check_branch
      %443 = sbr.rel (%p441) target = $region36
    $region35: #{memory_matrix_block_v3.3} parent=5 // pred_region
      %s444 = ssub.s32 %s8, 2
      // Predicated region
      $region37: #{memory_matrix_block_v3.3} parent=35 // pred_check
        %p445 = pneg %p84
      $region38: #{memory_matrix_block_v3.3} parent=35 // pred_check_branch
        %447 = sbr.rel (%p445) target = $region40
      $region39: #{memory_matrix_block_v3.3} parent=35 // pred_region
        %p448 = scmp.lt.s32.totalorder %s14, 1
        %s449 = scalar_select %p448, %s14, 1
        %s450 = smul.addr %s449, 4
        %s451 = smul.addr %s450, 4
        %s452 = scalar_lea.vmem %s2, %s451
      $region40: #{memory_matrix_block_v3.3} parent=35 // pred_fallthru
        _
    $region36: #{memory_matrix_block_v3.3} parent=5 // pred_fallthru
      _
  $region6: #{memory_matrix_block_v3.3} parent=0 // loop_footer
    %s12 = sadd.s32 1, %s8
  $region7: #{memory_matrix_block_v3.3} parent=0 // loop_footer_branch
    %7 = sbr.rel target = $region3
  $region8: #{memory_matrix_block_v3.3} parent=0 // loop_exit
    _

</llo_original>
